<compile_context>
chip_gen: v7x
topology: tpu7x:2x2x1
jax: 0.10.0
libtpu: 0.0.40
codegen_flags: <defaults>
</compile_context>

<pallas_src>
import functools

import jax
import jax.numpy as jnp
from jax import lax
from jax.experimental import pallas as pl
from jax.experimental.pallas import tpu as pltpu


_LANE = 128
_VMEM_BYTES_PER_COL = 256          # conservative VMEM footprint per batch column
_MAX_TILE = 128 * 1024             # review: 32K-128K columns is ample


def _round_up(x, m):
    return ((x + m - 1) // m) * m


def _vmem_limit_bytes():
    """Generation-aware scoped-VMEM limit (v7x: 64 MiB phys, v5e/v6e: 128 MiB)."""
    try:
        phys = int(pltpu.get_tpu_info().vmem_capacity_bytes)
    except Exception:
        phys = 64 * 1024 * 1024    # conservative (v7x) fallback
    return int(min(phys * 3 // 4, 96 * 1024 * 1024))


def _choose_tile(batch, tile_b, vmem_limit):
    """Batch-tile width (the lane axis inside the kernel)."""
    cap = (vmem_limit // 2) // _VMEM_BYTES_PER_COL
    cap = max(_LANE, (min(_MAX_TILE, cap) // _LANE) * _LANE)
    if tile_b is not None:
        # Honor the caller but enforce 128-lane alignment (feedback item).
        tb = min(cap, max(_LANE, _round_up(int(tile_b), _LANE)))
        return batch if tb >= batch else tb
    if batch <= 2048:
        return batch               # single full-extent block (legal for any B)
    # Split into >=2 tiles so ("parallel",) can feed both v7x TensorCores.
    return min(cap, _round_up(-(-batch // 2), _LANE))


def mlp_kernel(x_ref,
               w1_ref, b1_ref, w2_ref, b2_ref,
               w3_ref, b3_ref, w4_ref, b4_ref,
               o_ref, *, matmul_dtype):
    cast = lambda a: a.astype(matmul_dtype)
    x = x_ref[...]                                    # (TB, 6) batch-major block

    # fc1: contract the shared feature axis of w1 (10, 6) and x (TB, 6) -> (10, TB).
    # The transposed-rhs contraction keeps x in its HBM layout (no wrapper
    # transpose) and leaves all activations feature-major / lane-dense.
    dn = (((1,), (1,)), ((), ()))
    h = lax.dot_general(cast(w1_ref[...]), cast(x), dn,
                        preferred_element_type=jnp.float32)
    h = jnp.maximum(h + b1_ref[...], 0.0)             # f32 elementwise (v5e-safe)

    h = jnp.dot(cast(w2_ref[...]), cast(h), preferred_element_type=jnp.float32)
    h = jnp.maximum(h + b2_ref[...], 0.0)

    h = jnp.dot(cast(w3_ref[...]), cast(h), preferred_element_type=jnp.float32)
    h = jnp.maximum(h + b3_ref[...], 0.0)

    h = jnp.dot(cast(w4_ref[...]), cast(h), preferred_element_type=jnp.float32)
    o_ref[...] = jax.nn.sigmoid(h + b4_ref[...]).astype(o_ref.dtype)


def mlp_forward(x, params, tile_b=None, matmul_dtype=jnp.float32):
    """x: (B, 6) float32. params: w{i}: (out, in), b{i}: (out, 1). Returns (B, 2)."""
    batch = x.shape[0]
    x = x.astype(jnp.float32)

    vmem_limit = _vmem_limit_bytes()
    tb = _choose_tile(batch, tile_b, vmem_limit)
    grid = (pl.cdiv(batch, tb),)

    const = lambda i: (0, 0)       # weights & biases stay VMEM-resident
    in_specs = [
        pl.BlockSpec((tb, 6), lambda i: (i, 0)),      # x: batch-major ingest, no pad
        pl.BlockSpec((10, 6), const), pl.BlockSpec((10, 1), const),
        pl.BlockSpec((10, 10), const), pl.BlockSpec((10, 1), const),
        pl.BlockSpec((10, 10), const), pl.BlockSpec((10, 1), const),
        pl.BlockSpec((2, 10), const), pl.BlockSpec((2, 1), const),
    ]
    out_spec = pl.BlockSpec((2, tb), lambda i: (0, i))   # lane-dense output tiles

    out = pl.pallas_call(
        functools.partial(mlp_kernel, matmul_dtype=matmul_dtype),
        out_shape=jax.ShapeDtypeStruct((2, batch), jnp.float32),
        grid=grid,
        in_specs=in_specs,
        out_specs=out_spec,
        compiler_params=pltpu.CompilerParams(
            dimension_semantics=("parallel",),        # v7x: shard tiles over 2 TCs
            vmem_limit_bytes=vmem_limit),
    )(
        x,
        params["w1"], params["b1"], params["w2"], params["b2"],
        params["w3"], params["b3"], params["w4"], params["b4"],
    )
    return out.T                                       # (B, 2); tiny wrapper transpose


def init_params(key):
    """PyTorch nn.Linear-style init: U(-1/sqrt(fan_in), 1/sqrt(fan_in)).
    Weights stored (out, in) like torch; biases stored (out, 1)."""
    dims = [(6, 10), (10, 10), (10, 10), (10, 2)]
    params = {}
    keys = jax.random.split(key, 2 * len(dims))
    for i, (fan_in, fan_out) in enumerate(dims):
        bound = 1.0 / float(fan_in) ** 0.5
        params[f"w{i + 1}"] = jax.random.uniform(
            keys[2 * i], (fan_out, fan_in), minval=-bound, maxval=bound,
            dtype=jnp.float32)
        params[f"b{i + 1}"] = jax.random.uniform(
            keys[2 * i + 1], (fan_out, 1), minval=-bound, maxval=bound,
            dtype=jnp.float32)
    return params


def reference_forward(x, params):
    h = jax.nn.relu(x @ params["w1"].T + params["b1"].T)
    h = jax.nn.relu(h @ params["w2"].T + params["b2"].T)
    h = jax.nn.relu(h @ params["w3"].T + params["b3"].T)
    return jax.nn.sigmoid(h @ params["w4"].T + params["b4"].T)


if __name__ == "__main__":
    key = jax.random.PRNGKey(0)
    pkey, k1, k2, k3 = jax.random.split(key, 4)
    params = init_params(pkey)

    # Case 1: tiny batch -> single full-extent block (grid of 1).
    x1 = jax.random.normal(k1, (8, 6), dtype=jnp.float32)
    o1 = jax.block_until_ready(mlp_forward(x1, params))
    assert o1.shape == (8, 2)
    assert jnp.allclose(o1, reference_forward(x1, params), atol=1e-5, rtol=1e-5)

    # Case 2: ragged batch + non-128-multiple tile request -> tile rounded to 256,
    # 3 pipelined grid steps, masked tail block (no host-side pad copy).
    x2 = jax.random.normal(k2, (600, 6), dtype=jnp.float32)
    o2 = jax.block_until_ready(mlp_forward(x2, params, tile_b=250))
    assert o2.shape == (600, 2)
    assert jnp.allclose(o2, reference_forward(x2, params), atol=1e-5, rtol=1e-5)

    # Case 3: larger batch -> auto tiling splits into 2 "parallel" tiles (megacore).
    x3 = jax.random.normal(k3, (4096, 6), dtype=jnp.float32)
    o3 = jax.block_until_ready(mlp_forward(x3, params))
    assert o3.shape == (4096, 2)
    assert jnp.allclose(o3, reference_forward(x3, params), atol=1e-5, rtol=1e-5)

    # bf16 MXU-operand path (perf feedback): f32 accumulate/elementwise, relaxed tol.
    o3b = jax.block_until_ready(mlp_forward(x3, params, matmul_dtype=jnp.bfloat16))
    assert o3b.shape == (4096, 2)
    assert jnp.allclose(o3b, reference_forward(x3, params), atol=2e-2)

    print("KERNEL_OK")
</pallas_src>

<mosaic_0001>
module attributes {stable_mosaic.version = 11 : i64} {
  func.func @mlp_kernel(%arg0: i32, %arg1: memref<8x6xf32, #tpu.memory_space<vmem>>, %arg2: memref<10x6xf32, #tpu.memory_space<vmem>>, %arg3: memref<10x1xf32, #tpu.memory_space<vmem>>, %arg4: memref<10x10xf32, #tpu.memory_space<vmem>>, %arg5: memref<10x1xf32, #tpu.memory_space<vmem>>, %arg6: memref<10x10xf32, #tpu.memory_space<vmem>>, %arg7: memref<10x1xf32, #tpu.memory_space<vmem>>, %arg8: memref<2x10xf32, #tpu.memory_space<vmem>>, %arg9: memref<2x1xf32, #tpu.memory_space<vmem>>, %arg10: memref<2x8xf32, #tpu.memory_space<vmem>>) attributes {dimension_semantics = [#tpu.dimension_semantics<parallel>], iteration_bounds = array<i64: 1>, scalar_prefetch = 0 : i64, scratch_operands = 0 : i64, tpu.core_type = #tpu.core_type<tc>, window_params = [{transform_indices = @transform_0, window_bounds = array<i64: 8, 6>}, {pipeline_mode = #tpu.pipeline_mode<synchronous>, transform_indices = @transform_1, window_bounds = array<i64: 10, 6>}, {pipeline_mode = #tpu.pipeline_mode<synchronous>, transform_indices = @transform_2, window_bounds = array<i64: 10, 1>}, {pipeline_mode = #tpu.pipeline_mode<synchronous>, transform_indices = @transform_3, window_bounds = array<i64: 10, 10>}, {pipeline_mode = #tpu.pipeline_mode<synchronous>, transform_indices = @transform_4, window_bounds = array<i64: 10, 1>}, {pipeline_mode = #tpu.pipeline_mode<synchronous>, transform_indices = @transform_5, window_bounds = array<i64: 10, 10>}, {pipeline_mode = #tpu.pipeline_mode<synchronous>, transform_indices = @transform_6, window_bounds = array<i64: 10, 1>}, {pipeline_mode = #tpu.pipeline_mode<synchronous>, transform_indices = @transform_7, window_bounds = array<i64: 2, 10>}, {pipeline_mode = #tpu.pipeline_mode<synchronous>, transform_indices = @transform_8, window_bounds = array<i64: 2, 1>}, {transform_indices = @transform_9, window_bounds = array<i64: 2, 8>}]} {
    %c0 = arith.constant 0 : index
    %c0_0 = arith.constant 0 : index
    %0 = vector.load %arg1[%c0, %c0_0] : memref<8x6xf32, #tpu.memory_space<vmem>>, vector<8x6xf32>
    %c0_1 = arith.constant 0 : index
    %c0_2 = arith.constant 0 : index
    %1 = vector.load %arg2[%c0_1, %c0_2] : memref<10x6xf32, #tpu.memory_space<vmem>>, vector<10x6xf32>
    %cst = arith.constant dense<0.000000e+00> : vector<10x8xf32>
    %2 = tpu.matmul %1, %0, %cst {dimension_numbers = #tpu.dot_dimension_numbers<[1], [1], [0], [0], [0, 0, 1, 0], [], []>} : vector<10x6xf32>, vector<8x6xf32>, vector<10x8xf32> -> vector<10x8xf32>
    %c0_3 = arith.constant 0 : index
    %c0_4 = arith.constant 0 : index
    %3 = vector.load %arg3[%c0_3, %c0_4] : memref<10x1xf32, #tpu.memory_space<vmem>>, vector<10x1xf32>
    %4 = vector.broadcast %3 : vector<10x1xf32> to vector<10x8xf32>
    %5 = arith.addf %2, %4 : vector<10x8xf32>
    %cst_5 = arith.constant 0.000000e+00 : f32
    %6 = vector.broadcast %cst_5 : f32 to vector<10x8xf32>
    %7 = arith.maximumf %5, %6 : vector<10x8xf32>
    %c0_6 = arith.constant 0 : index
    %c0_7 = arith.constant 0 : index
    %8 = vector.load %arg4[%c0_6, %c0_7] : memref<10x10xf32, #tpu.memory_space<vmem>>, vector<10x10xf32>
    %cst_8 = arith.constant dense<0.000000e+00> : vector<10x8xf32>
    %9 = tpu.matmul %8, %7, %cst_8 {dimension_numbers = #tpu.dot_dimension_numbers<[1], [0], [0], [1], [0, 0, 1, 1], [], []>} : vector<10x10xf32>, vector<10x8xf32>, vector<10x8xf32> -> vector<10x8xf32>
    %c0_9 = arith.constant 0 : index
    %c0_10 = arith.constant 0 : index
    %10 = vector.load %arg5[%c0_9, %c0_10] : memref<10x1xf32, #tpu.memory_space<vmem>>, vector<10x1xf32>
    %11 = vector.broadcast %10 : vector<10x1xf32> to vector<10x8xf32>
    %12 = arith.addf %9, %11 : vector<10x8xf32>
    %cst_11 = arith.constant 0.000000e+00 : f32
    %13 = vector.broadcast %cst_11 : f32 to vector<10x8xf32>
    %14 = arith.maximumf %12, %13 : vector<10x8xf32>
    %c0_12 = arith.constant 0 : index
    %c0_13 = arith.constant 0 : index
    %15 = vector.load %arg6[%c0_12, %c0_13] : memref<10x10xf32, #tpu.memory_space<vmem>>, vector<10x10xf32>
    %cst_14 = arith.constant dense<0.000000e+00> : vector<10x8xf32>
    %16 = tpu.matmul %15, %14, %cst_14 {dimension_numbers = #tpu.dot_dimension_numbers<[1], [0], [0], [1], [0, 0, 1, 1], [], []>} : vector<10x10xf32>, vector<10x8xf32>, vector<10x8xf32> -> vector<10x8xf32>
    %c0_15 = arith.constant 0 : index
    %c0_16 = arith.constant 0 : index
    %17 = vector.load %arg7[%c0_15, %c0_16] : memref<10x1xf32, #tpu.memory_space<vmem>>, vector<10x1xf32>
    %18 = vector.broadcast %17 : vector<10x1xf32> to vector<10x8xf32>
    %19 = arith.addf %16, %18 : vector<10x8xf32>
    %cst_17 = arith.constant 0.000000e+00 : f32
    %20 = vector.broadcast %cst_17 : f32 to vector<10x8xf32>
    %21 = arith.maximumf %19, %20 : vector<10x8xf32>
    %c0_18 = arith.constant 0 : index
    %c0_19 = arith.constant 0 : index
    %22 = vector.load %arg8[%c0_18, %c0_19] : memref<2x10xf32, #tpu.memory_space<vmem>>, vector<2x10xf32>
    %cst_20 = arith.constant dense<0.000000e+00> : vector<2x8xf32>
    %23 = tpu.matmul %22, %21, %cst_20 {dimension_numbers = #tpu.dot_dimension_numbers<[1], [0], [0], [1], [0, 0, 1, 1], [], []>} : vector<2x10xf32>, vector<10x8xf32>, vector<2x8xf32> -> vector<2x8xf32>
    %c0_21 = arith.constant 0 : index
    %c0_22 = arith.constant 0 : index
    %24 = vector.load %arg9[%c0_21, %c0_22] : memref<2x1xf32, #tpu.memory_space<vmem>>, vector<2x1xf32>
    %25 = vector.broadcast %24 : vector<2x1xf32> to vector<2x8xf32>
    %26 = arith.addf %23, %25 : vector<2x8xf32>
    %27 = arith.negf %26 : vector<2x8xf32>
    %28 = math.exp %27 : vector<2x8xf32>
    %cst_23 = arith.constant 1.000000e+00 : f32
    %29 = vector.broadcast %cst_23 : f32 to vector<2x8xf32>
    %30 = arith.addf %29, %28 : vector<2x8xf32>
    %31 = arith.divf %29, %30 : vector<2x8xf32>
    %c0_24 = arith.constant 0 : index
    %c0_25 = arith.constant 0 : index
    %32 = vector.load %arg10[%c0_24, %c0_25] : memref<2x8xf32, #tpu.memory_space<vmem>>, vector<2x8xf32>
    tpu.vector_store %arg10[%c0_24, %c0_25], %31 {strides = array<i32>} : memref<2x8xf32, #tpu.memory_space<vmem>>, vector<2x8xf32>,
    return
  }
  func.func @transform_0(%arg0: i32) -> (i32, i32) {
    %c0_i32 = arith.constant 0 : i32
    %c0_i32_0 = arith.constant 0 : i32
    return %arg0, %c0_i32 : i32, i32
  }
  func.func @transform_1(%arg0: i32) -> (i32, i32) {
    %c0_i32 = arith.constant 0 : i32
    %c0_i32_0 = arith.constant 0 : i32
    %c0_i32_1 = arith.constant 0 : i32
    return %c0_i32, %c0_i32_0 : i32, i32
  }
  func.func @transform_2(%arg0: i32) -> (i32, i32) {
    %c0_i32 = arith.constant 0 : i32
    %c0_i32_0 = arith.constant 0 : i32
    %c0_i32_1 = arith.constant 0 : i32
    return %c0_i32, %c0_i32_0 : i32, i32
  }
  func.func @transform_3(%arg0: i32) -> (i32, i32) {
    %c0_i32 = arith.constant 0 : i32
    %c0_i32_0 = arith.constant 0 : i32
    %c0_i32_1 = arith.constant 0 : i32
    return %c0_i32, %c0_i32_0 : i32, i32
  }
  func.func @transform_4(%arg0: i32) -> (i32, i32) {
    %c0_i32 = arith.constant 0 : i32
    %c0_i32_0 = arith.constant 0 : i32
    %c0_i32_1 = arith.constant 0 : i32
    return %c0_i32, %c0_i32_0 : i32, i32
  }
  func.func @transform_5(%arg0: i32) -> (i32, i32) {
    %c0_i32 = arith.constant 0 : i32
    %c0_i32_0 = arith.constant 0 : i32
    %c0_i32_1 = arith.constant 0 : i32
    return %c0_i32, %c0_i32_0 : i32, i32
  }
  func.func @transform_6(%arg0: i32) -> (i32, i32) {
    %c0_i32 = arith.constant 0 : i32
    %c0_i32_0 = arith.constant 0 : i32
    %c0_i32_1 = arith.constant 0 : i32
    return %c0_i32, %c0_i32_0 : i32, i32
  }
  func.func @transform_7(%arg0: i32) -> (i32, i32) {
    %c0_i32 = arith.constant 0 : i32
    %c0_i32_0 = arith.constant 0 : i32
    %c0_i32_1 = arith.constant 0 : i32
    return %c0_i32, %c0_i32_0 : i32, i32
  }
  func.func @transform_8(%arg0: i32) -> (i32, i32) {
    %c0_i32 = arith.constant 0 : i32
    %c0_i32_0 = arith.constant 0 : i32
    %c0_i32_1 = arith.constant 0 : i32
    return %c0_i32, %c0_i32_0 : i32, i32
  }
  func.func @transform_9(%arg0: i32) -> (i32, i32) {
    %c0_i32 = arith.constant 0 : i32
    %c0_i32_0 = arith.constant 0 : i32
    return %c0_i32, %arg0 : i32, i32
  }
}

</mosaic_0001>

<llo_original>
// kernel: tpu_custom_call.1
$region0: #{tpu_custom_call.1}
  #allocation0 [shape = 'u32[]', space=smem, size = 0x4, offset = 0x4, fixed_abs, tag = 'smem constant byte address 0x4 - core index']
  #allocation1 [shape = 'u32[144,128]{1,0:T(1,128)}', space=vmem, size = 0x12000, scoped, tag = 'internal scratch']
  %s0 = inlined_call_operand.vmem [shape: f32[8,6], index: 0, kind: input, shape index: {}]
  %s1 = inlined_call_operand.vmem [shape: f32[10,6], index: 1, kind: input, shape index: {}]
  %s2 = inlined_call_operand.vmem [shape: f32[10,1], index: 2, kind: input, shape index: {}]
  %s3 = inlined_call_operand.vmem [shape: f32[10,10], index: 3, kind: input, shape index: {}]
  %s4 = inlined_call_operand.vmem [shape: f32[10,1], index: 4, kind: input, shape index: {}]
  %s5 = inlined_call_operand.vmem [shape: f32[10,10], index: 5, kind: input, shape index: {}]
  %s6 = inlined_call_operand.vmem [shape: f32[10,1], index: 6, kind: input, shape index: {}]
  %s7 = inlined_call_operand.vmem [shape: f32[2,10], index: 7, kind: input, shape index: {}]
  %s8 = inlined_call_operand.vmem [shape: f32[2,1], index: 8, kind: input, shape index: {}]
  %s9 = inlined_call_operand.hbm [shape: f32[2,8], index: 9, kind: output, shape index: {}]
  %s10 = sld [smem:[#allocation0]]
  $region46: #{tpu_custom_call.1} parent=0
    _
  %s12 = ssub.s32 1, %s10
  %s13 = scalar_select 0, %s12, %s10
  $region1: #{tpu_custom_call.1} parent=0
    #allocation2 [shape = 'u8[1024]{0}', space=vmem, size = 0x400, scoped, tag = 'output window, operand 0, single buffered']
    #allocation3 [shape = 's32[1]{0}', space=sflag, size = 0x4, scoped, tag = 'scoped memory for tpu_custom_call.1']
    %14 = vsyncpa [#allocation3], 0
    // Predicated region
    $region2: #{tpu_custom_call.1} parent=1 // pred_check
      _
    $region3: #{tpu_custom_call.1} parent=1 // pred_check_branch
      %16 = sbr.rel (0) target = $region5
    $region4: #{tpu_custom_call.1} parent=1 // pred_region
      _
    $region5: #{tpu_custom_call.1} parent=1 // pred_fallthru
      _
    // Predicated region
    $region6: #{tpu_custom_call.1} parent=1 // pred_check
      _
    $region7: #{tpu_custom_call.1} parent=1 // pred_check_branch
      %18 = sbr.rel (0) target = $region9
    $region8: #{tpu_custom_call.1} parent=1 // pred_region
      _
    $region9: #{tpu_custom_call.1} parent=1 // pred_fallthru
      _
    // Predicated region
    $region10: #{tpu_custom_call.1} parent=1 // pred_check
      _
    $region11: #{tpu_custom_call.1} parent=1 // pred_check_branch
      %20 = sbr.rel (0) target = $region13
    $region12: #{tpu_custom_call.1} parent=1 // pred_region
      _
    $region13: #{tpu_custom_call.1} parent=1 // pred_fallthru
      _
    // Predicated region
    $region14: #{tpu_custom_call.1} parent=1 // pred_check
      _
    $region15: #{tpu_custom_call.1} parent=1 // pred_check_branch
      %22 = sbr.rel (0) target = $region17
    $region16: #{tpu_custom_call.1} parent=1 // pred_region
      _
    $region17: #{tpu_custom_call.1} parent=1 // pred_fallthru
      _
    // Predicated region
    $region18: #{tpu_custom_call.1} parent=1 // pred_check
      _
    $region19: #{tpu_custom_call.1} parent=1 // pred_check_branch
      %24 = sbr.rel (0) target = $region21
    $region20: #{tpu_custom_call.1} parent=1 // pred_region
      _
    $region21: #{tpu_custom_call.1} parent=1 // pred_fallthru
      _
    // Predicated region
    $region22: #{tpu_custom_call.1} parent=1 // pred_check
      _
    $region23: #{tpu_custom_call.1} parent=1 // pred_check_branch
      %26 = sbr.rel (0) target = $region25
    $region24: #{tpu_custom_call.1} parent=1 // pred_region
      _
    $region25: #{tpu_custom_call.1} parent=1 // pred_fallthru
      _
    // Predicated region
    $region26: #{tpu_custom_call.1} parent=1 // pred_check
      _
    $region27: #{tpu_custom_call.1} parent=1 // pred_check_branch
      %28 = sbr.rel (0) target = $region29
    $region28: #{tpu_custom_call.1} parent=1 // pred_region
      _
    $region29: #{tpu_custom_call.1} parent=1 // pred_fallthru
      _
    // Predicated region
    $region30: #{tpu_custom_call.1} parent=1 // pred_check
      _
    $region31: #{tpu_custom_call.1} parent=1 // pred_check_branch
      %30 = sbr.rel (0) target = $region33
    $region32: #{tpu_custom_call.1} parent=1 // pred_region
      _
    $region33: #{tpu_custom_call.1} parent=1 // pred_fallthru
      _
    // Predicated region
    $region34: #{tpu_custom_call.1} parent=1 // pred_check
      _
    $region35: #{tpu_custom_call.1} parent=1 // pred_check_branch
      %32 = sbr.rel (0) target = $region37
    $region36: #{tpu_custom_call.1} parent=1 // pred_region
      _
    $region37: #{tpu_custom_call.1} parent=1 // pred_fallthru
      _
    %v33 = vld [vmem:[%s0] sm:$0xff]
    %v34 = vld [vmem:[%s1] sm:$0xff]
    %v35 = vld [vmem:[%s1 + $0x8] sm:$0x3]
    %v36 = vld [vmem:[%s2] sm:$0xff]
    %v37 = vld [vmem:[%s2 + $0x8] sm:$0x3]
    %39 = vset.pattern.permute.xlu0 0
    %40 = vperm.xlu0 %39, %v36
    %v41 = vpop.permute.xlu0 %40
    %44 = vset.pattern.permute.xlu0 0
    %45 = vperm.xlu0 %44, %v37
    %v46 = vpop.permute.xlu0 %45
    %vm48 = vcmask 48128
    %v50 = vsel %vm48, %v34, 0
    %v53 = vsel %vm48, %v35, 0
    %v56 = vsel %vm48, %v33, 0
    %58 = vmatprep.subr.mxu0 0.0
    %59 = vmatpush1.xpose.msra.mxu0 %v56
    %60 = vmatprep.subr.mxu0 0.0
    %61 = vmatpush1.xpose.msra.mxu0 0.0
    %62 = vmatprep.subr.mxu0 0.0
    %63 = vmatpush1.xpose.msra.mxu0 0.0
    %64 = vmatprep.subr.mxu0 0.0
    %65 = vmatpush1.xpose.msra.mxu0 0.0
    %66 = vmatprep.subr.mxu0 0.0
    %67 = vmatpush1.xpose.msra.mxu0 0.0
    %68 = vmatprep.subr.mxu0 0.0
    %69 = vmatpush1.xpose.msra.mxu0 0.0
    %70 = vmatprep.subr.mxu0 0.0
    %71 = vmatpush1.xpose.msra.mxu0 0.0
    %72 = vmatprep.subr.mxu0 0.0
    %73 = vmatpush1.xpose.msra.mxu0 0.0
    %74 = vmatprep.subr.mxu0 0.0
    %75 = vmatpush1.xpose.msra.mxu0 0.0
    %76 = vmatprep.subr.mxu0 0.0
    %77 = vmatpush1.xpose.msra.mxu0 0.0
    %78 = vmatprep.subr.mxu0 0.0
    %79 = vmatpush1.xpose.msra.mxu0 0.0
    %80 = vmatprep.subr.mxu0 0.0
    %81 = vmatpush1.xpose.msra.mxu0 0.0
    %82 = vmatprep.subr.mxu0 0.0
    %83 = vmatpush1.xpose.msra.mxu0 0.0
    %84 = vmatprep.subr.mxu0 0.0
    %85 = vmatpush1.xpose.msra.mxu0 0.0
    %86 = vmatprep.subr.mxu0 0.0
    %87 = vmatpush1.xpose.msra.mxu0 0.0
    %88 = vmatprep.subr.mxu0 0.0
    %89 = vmatpush1.xpose.msra.mxu0 0.0
    %90 = vmatprep.subr.mxu0 0.0
    %91 = vmatpush1.xpose.msra.mxu0 0.0
    %92 = vmatprep.subr.mxu0 0.0
    %93 = vmatpush1.xpose.msra.mxu0 0.0
    %94 = vmatprep.subr.mxu0 0.0
    %95 = vmatpush1.xpose.msra.mxu0 0.0
    %96 = vmatprep.subr.mxu0 0.0
    %97 = vmatpush1.xpose.msra.mxu0 0.0
    %98 = vmatprep.subr.mxu0 0.0
    %99 = vmatpush1.xpose.msra.mxu0 0.0
    %100 = vmatprep.subr.mxu0 0.0
    %101 = vmatpush1.xpose.msra.mxu0 0.0
    %102 = vmatprep.subr.mxu0 0.0
    %103 = vmatpush1.xpose.msra.mxu0 0.0
    %104 = vmatprep.subr.mxu0 0.0
    %105 = vmatpush1.xpose.msra.mxu0 0.0
    %106 = vmatprep.subr.mxu0 0.0
    %107 = vmatpush1.xpose.msra.mxu0 0.0
    %108 = vmatprep.subr.mxu0 0.0
    %109 = vmatpush1.xpose.msra.mxu0 0.0
    %110 = vmatprep.subr.mxu0 0.0
    %111 = vmatpush1.xpose.msra.mxu0 0.0
    %112 = vmatprep.subr.mxu0 0.0
    %113 = vmatpush1.xpose.msra.mxu0 0.0
    %114 = vmatprep.subr.mxu0 0.0
    %115 = vmatpush1.xpose.msra.mxu0 0.0
    %116 = vmatprep.subr.mxu0 0.0
    %117 = vmatpush1.xpose.msra.mxu0 0.0
    %118 = vmatprep.subr.mxu0 0.0
    %119 = vmatpush1.xpose.msra.mxu0 0.0
    %120 = vmatprep.subr.mxu0 0.0
    %121 = vmatpush1.xpose.msra.mxu0 0.0
    %122 = vmatprep.mubr.f32.mxu0 0.0
    %123 = vmatmul.mubr.f32.gmra.mrb[0].mxu0 %v50
    %v124 = vpop.f32.mrb[0].mxu0
    %v125 = vadd.f32 %v41, %v124
    %v126 = vpop.f32.mrb[0].mxu0
    %127 = vmatprep.mubr.f32.mxu0 0.0
    %128 = vmatmul.mubr.f32.gmra.mrb[0].mxu0 %v53
    %v129 = vpop.f32.mrb[0].mxu0
    %v130 = vadd.f32 %v46, %v129
    %v131 = vpop.f32.mrb[0].mxu0
    %132 = vdwg.mxu0
    %v133 = vmax.f32 %v125, 0.0
    %v134 = vmax.f32 %v130, 0.0
    %v135 = vld [vmem:[%s3] sm:$0xff]
    %v136 = vld [vmem:[%s3 + $0x8] sm:$0x3]
    %v137 = vld [vmem:[%s4] sm:$0xff]
    %v138 = vld [vmem:[%s4 + $0x8] sm:$0x3]
    %140 = vset.pattern.permute.xlu0 0
    %141 = vperm.xlu0 %140, %v137
    %v142 = vpop.permute.xlu0 %141
    %145 = vset.pattern.permute.xlu0 0
    %146 = vperm.xlu0 %145, %v138
    %v147 = vpop.permute.xlu0 %146
    %vm149 = vcmask 80896
    %v151 = vsel %vm149, %v135, 0
    %v154 = vsel %vm149, %v136, 0
    %vm156 = vcmask 1041408
    %v158 = vsel %vm156, %v134, 0
    %160 = vmatprep.subr.mxu0 0.0
    %161 = vmatpush1.msra.mxu0 %v133
    %162 = vmatprep.subr.mxu0 0.0
    %163 = vmatpush1.msra.mxu0 %v158
    %164 = vmatprep.subr.mxu0 0.0
    %165 = vmatpush1.msra.mxu0 0.0
    %166 = vmatprep.subr.mxu0 0.0
    %167 = vmatpush1.msra.mxu0 0.0
    %168 = vmatprep.subr.mxu0 0.0
    %169 = vmatpush1.msra.mxu0 0.0
    %170 = vmatprep.subr.mxu0 0.0
    %171 = vmatpush1.msra.mxu0 0.0
    %172 = vmatprep.subr.mxu0 0.0
    %173 = vmatpush1.msra.mxu0 0.0
    %174 = vmatprep.subr.mxu0 0.0
    %175 = vmatpush1.msra.mxu0 0.0
    %176 = vmatprep.subr.mxu0 0.0
    %177 = vmatpush1.msra.mxu0 0.0
    %178 = vmatprep.subr.mxu0 0.0
    %179 = vmatpush1.msra.mxu0 0.0
    %180 = vmatprep.subr.mxu0 0.0
    %181 = vmatpush1.msra.mxu0 0.0
    %182 = vmatprep.subr.mxu0 0.0
    %183 = vmatpush1.msra.mxu0 0.0
    %184 = vmatprep.subr.mxu0 0.0
    %185 = vmatpush1.msra.mxu0 0.0
    %186 = vmatprep.subr.mxu0 0.0
    %187 = vmatpush1.msra.mxu0 0.0
    %188 = vmatprep.subr.mxu0 0.0
    %189 = vmatpush1.msra.mxu0 0.0
    %190 = vmatprep.subr.mxu0 0.0
    %191 = vmatpush1.msra.mxu0 0.0
    %192 = vmatprep.subr.mxu0 0.0
    %193 = vmatpush1.msra.mxu0 0.0
    %194 = vmatprep.subr.mxu0 0.0
    %195 = vmatpush1.msra.mxu0 0.0
    %196 = vmatprep.subr.mxu0 0.0
    %197 = vmatpush1.msra.mxu0 0.0
    %198 = vmatprep.subr.mxu0 0.0
    %199 = vmatpush1.msra.mxu0 0.0
    %200 = vmatprep.subr.mxu0 0.0
    %201 = vmatpush1.msra.mxu0 0.0
    %202 = vmatprep.subr.mxu0 0.0
    %203 = vmatpush1.msra.mxu0 0.0
    %204 = vmatprep.subr.mxu0 0.0
    %205 = vmatpush1.msra.mxu0 0.0
    %206 = vmatprep.subr.mxu0 0.0
    %207 = vmatpush1.msra.mxu0 0.0
    %208 = vmatprep.subr.mxu0 0.0
    %209 = vmatpush1.msra.mxu0 0.0
    %210 = vmatprep.subr.mxu0 0.0
    %211 = vmatpush1.msra.mxu0 0.0
    %212 = vmatprep.subr.mxu0 0.0
    %213 = vmatpush1.msra.mxu0 0.0
    %214 = vmatprep.subr.mxu0 0.0
    %215 = vmatpush1.msra.mxu0 0.0
    %216 = vmatprep.subr.mxu0 0.0
    %217 = vmatpush1.msra.mxu0 0.0
    %218 = vmatprep.subr.mxu0 0.0
    %219 = vmatpush1.msra.mxu0 0.0
    %220 = vmatprep.subr.mxu0 0.0
    %221 = vmatpush1.msra.mxu0 0.0
    %222 = vmatprep.subr.mxu0 0.0
    %223 = vmatpush1.msra.mxu0 0.0
    %224 = vmatprep.mubr.f32.mxu0 0.0
    %225 = vmatmul.mubr.f32.gmra.mrb[0].mxu0 %v151
    %v226 = vpop.f32.mrb[0].mxu0
    %v227 = vadd.f32 %v142, %v226
    %v228 = vpop.f32.mrb[0].mxu0
    %229 = vmatprep.mubr.f32.mxu0 0.0
    %230 = vmatmul.mubr.f32.gmra.mrb[0].mxu0 %v154
    %v231 = vpop.f32.mrb[0].mxu0
    %v232 = vadd.f32 %v147, %v231
    %v233 = vpop.f32.mrb[0].mxu0
    %234 = vdwg.mxu0
    %v235 = vmax.f32 %v227, 0.0
    %v236 = vmax.f32 %v232, 0.0
    %v237 = vld [vmem:[%s5] sm:$0xff]
    %v238 = vld [vmem:[%s5 + $0x8] sm:$0x3]
    %v239 = vld [vmem:[%s6] sm:$0xff]
    %v240 = vld [vmem:[%s6 + $0x8] sm:$0x3]
    %242 = vset.pattern.permute.xlu0 0
    %243 = vperm.xlu0 %242, %v239
    %v244 = vpop.permute.xlu0 %243
    %247 = vset.pattern.permute.xlu0 0
    %248 = vperm.xlu0 %247, %v240
    %v249 = vpop.permute.xlu0 %248
    %v252 = vsel %vm149, %v237, 0
    %v255 = vsel %vm149, %v238, 0
    %v258 = vsel %vm156, %v236, 0
    %260 = vmatprep.subr.mxu0 0.0
    %261 = vmatpush1.msra.mxu0 %v235
    %262 = vmatprep.subr.mxu0 0.0
    %263 = vmatpush1.msra.mxu0 %v258
    %264 = vmatprep.subr.mxu0 0.0
    %265 = vmatpush1.msra.mxu0 0.0
    %266 = vmatprep.subr.mxu0 0.0
    %267 = vmatpush1.msra.mxu0 0.0
    %268 = vmatprep.subr.mxu0 0.0
    %269 = vmatpush1.msra.mxu0 0.0
    %270 = vmatprep.subr.mxu0 0.0
    %271 = vmatpush1.msra.mxu0 0.0
    %272 = vmatprep.subr.mxu0 0.0
    %273 = vmatpush1.msra.mxu0 0.0
    %274 = vmatprep.subr.mxu0 0.0
    %275 = vmatpush1.msra.mxu0 0.0
    %276 = vmatprep.subr.mxu0 0.0
    %277 = vmatpush1.msra.mxu0 0.0
    %278 = vmatprep.subr.mxu0 0.0
    %279 = vmatpush1.msra.mxu0 0.0
    %280 = vmatprep.subr.mxu0 0.0
    %281 = vmatpush1.msra.mxu0 0.0
    %282 = vmatprep.subr.mxu0 0.0
    %283 = vmatpush1.msra.mxu0 0.0
    %284 = vmatprep.subr.mxu0 0.0
    %285 = vmatpush1.msra.mxu0 0.0
    %286 = vmatprep.subr.mxu0 0.0
    %287 = vmatpush1.msra.mxu0 0.0
    %288 = vmatprep.subr.mxu0 0.0
    %289 = vmatpush1.msra.mxu0 0.0
    %290 = vmatprep.subr.mxu0 0.0
    %291 = vmatpush1.msra.mxu0 0.0
    %292 = vmatprep.subr.mxu0 0.0
    %293 = vmatpush1.msra.mxu0 0.0
    %294 = vmatprep.subr.mxu0 0.0
    %295 = vmatpush1.msra.mxu0 0.0
    %296 = vmatprep.subr.mxu0 0.0
    %297 = vmatpush1.msra.mxu0 0.0
    %298 = vmatprep.subr.mxu0 0.0
    %299 = vmatpush1.msra.mxu0 0.0
    %300 = vmatprep.subr.mxu0 0.0
    %301 = vmatpush1.msra.mxu0 0.0
    %302 = vmatprep.subr.mxu0 0.0
    %303 = vmatpush1.msra.mxu0 0.0
    %304 = vmatprep.subr.mxu0 0.0
    %305 = vmatpush1.msra.mxu0 0.0
    %306 = vmatprep.subr.mxu0 0.0
    %307 = vmatpush1.msra.mxu0 0.0
    %308 = vmatprep.subr.mxu0 0.0
    %309 = vmatpush1.msra.mxu0 0.0
    %310 = vmatprep.subr.mxu0 0.0
    %311 = vmatpush1.msra.mxu0 0.0
    %312 = vmatprep.subr.mxu0 0.0
    %313 = vmatpush1.msra.mxu0 0.0
    %314 = vmatprep.subr.mxu0 0.0
    %315 = vmatpush1.msra.mxu0 0.0
    %316 = vmatprep.subr.mxu0 0.0
    %317 = vmatpush1.msra.mxu0 0.0
    %318 = vmatprep.subr.mxu0 0.0
    %319 = vmatpush1.msra.mxu0 0.0
    %320 = vmatprep.subr.mxu0 0.0
    %321 = vmatpush1.msra.mxu0 0.0
    %322 = vmatprep.subr.mxu0 0.0
    %323 = vmatpush1.msra.mxu0 0.0
    %324 = vmatprep.mubr.f32.mxu0 0.0
    %325 = vmatmul.mubr.f32.gmra.mrb[0].mxu0 %v252
    %v326 = vpop.f32.mrb[0].mxu0
    %v327 = vadd.f32 %v244, %v326
    %v328 = vpop.f32.mrb[0].mxu0
    %329 = vmatprep.mubr.f32.mxu0 0.0
    %330 = vmatmul.mubr.f32.gmra.mrb[0].mxu0 %v255
    %v331 = vpop.f32.mrb[0].mxu0
    %v332 = vadd.f32 %v249, %v331
    %v333 = vpop.f32.mrb[0].mxu0
    %334 = vdwg.mxu0
    %v335 = vmax.f32 %v327, 0.0
    %v336 = vmax.f32 %v332, 0.0
    %v337 = vld [vmem:[%s7] sm:$0x3]
    %v338 = vld [vmem:[%s8] sm:$0x3]
    %340 = vset.pattern.permute.xlu0 0
    %341 = vperm.xlu0 %340, %v338
    %v342 = vpop.permute.xlu0 %341
    %v345 = vsel %vm149, %v337, 0
    %v348 = vsel %vm156, %v336, 0
    %350 = vmatprep.subr.mxu0 0.0
    %351 = vmatpush1.msra.mxu0 %v335
    %352 = vmatprep.subr.mxu0 0.0
    %353 = vmatpush1.msra.mxu0 %v348
    %354 = vmatprep.subr.mxu0 0.0
    %355 = vmatpush1.msra.mxu0 0.0
    %356 = vmatprep.subr.mxu0 0.0
    %357 = vmatpush1.msra.mxu0 0.0
    %358 = vmatprep.subr.mxu0 0.0
    %359 = vmatpush1.msra.mxu0 0.0
    %360 = vmatprep.subr.mxu0 0.0
    %361 = vmatpush1.msra.mxu0 0.0
    %362 = vmatprep.subr.mxu0 0.0
    %363 = vmatpush1.msra.mxu0 0.0
    %364 = vmatprep.subr.mxu0 0.0
    %365 = vmatpush1.msra.mxu0 0.0
    %366 = vmatprep.subr.mxu0 0.0
    %367 = vmatpush1.msra.mxu0 0.0
    %368 = vmatprep.subr.mxu0 0.0
    %369 = vmatpush1.msra.mxu0 0.0
    %370 = vmatprep.subr.mxu0 0.0
    %371 = vmatpush1.msra.mxu0 0.0
    %372 = vmatprep.subr.mxu0 0.0
    %373 = vmatpush1.msra.mxu0 0.0
    %374 = vmatprep.subr.mxu0 0.0
    %375 = vmatpush1.msra.mxu0 0.0
    %376 = vmatprep.subr.mxu0 0.0
    %377 = vmatpush1.msra.mxu0 0.0
    %378 = vmatprep.subr.mxu0 0.0
    %379 = vmatpush1.msra.mxu0 0.0
    %380 = vmatprep.subr.mxu0 0.0
    %381 = vmatpush1.msra.mxu0 0.0
    %382 = vmatprep.subr.mxu0 0.0
    %383 = vmatpush1.msra.mxu0 0.0
    %384 = vmatprep.subr.mxu0 0.0
    %385 = vmatpush1.msra.mxu0 0.0
    %386 = vmatprep.subr.mxu0 0.0
    %387 = vmatpush1.msra.mxu0 0.0
    %388 = vmatprep.subr.mxu0 0.0
    %389 = vmatpush1.msra.mxu0 0.0
    %390 = vmatprep.subr.mxu0 0.0
    %391 = vmatpush1.msra.mxu0 0.0
    %392 = vmatprep.subr.mxu0 0.0
    %393 = vmatpush1.msra.mxu0 0.0
    %394 = vmatprep.subr.mxu0 0.0
    %395 = vmatpush1.msra.mxu0 0.0
    %396 = vmatprep.subr.mxu0 0.0
    %397 = vmatpush1.msra.mxu0 0.0
    %398 = vmatprep.subr.mxu0 0.0
    %399 = vmatpush1.msra.mxu0 0.0
    %400 = vmatprep.subr.mxu0 0.0
    %401 = vmatpush1.msra.mxu0 0.0
    %402 = vmatprep.subr.mxu0 0.0
    %403 = vmatpush1.msra.mxu0 0.0
    %404 = vmatprep.subr.mxu0 0.0
    %405 = vmatpush1.msra.mxu0 0.0
    %406 = vmatprep.subr.mxu0 0.0
    %407 = vmatpush1.msra.mxu0 0.0
    %408 = vmatprep.subr.mxu0 0.0
    %409 = vmatpush1.msra.mxu0 0.0
    %410 = vmatprep.subr.mxu0 0.0
    %411 = vmatpush1.msra.mxu0 0.0
    %412 = vmatprep.subr.mxu0 0.0
    %413 = vmatpush1.msra.mxu0 0.0
    %414 = vmatprep.mubr.f32.mxu0 0.0
    %415 = vmatmul.mubr.f32.gmra.mrb[0].mxu0 %v345
    %v416 = vpop.f32.mrb[0].mxu0
    %v417 = vadd.f32 %v342, %v416
    %v418 = vpop.f32.mrb[0].mxu0
    %419 = vdwg.mxu0
    %v420 = vxor.u32 %v417, 2147483648
    %v421 = vmul.f32 %v420, 1.442695
    %v422 = vpow.pop %v421
    %v423 = vadd.f32 %v422, 1.0
    %v424 = vrcp.pop %v423
    %v425 = vmul.f32 1.0, %v424
    %vm426 = vcmask 58368
    %427 = vst.msk [vmem:[#allocation2] sm:$0x3] %vm426, %v425
    // Predicated region
    $region38: #{tpu_custom_call.1} parent=1 // pred_check
      _
    $region39: #{tpu_custom_call.1} parent=1 // pred_check_branch
      %429 = sbr.rel (0) target = $region41
    $region40: #{tpu_custom_call.1} parent=1 // pred_region
      %s431 = ssub.s32 32, 32
      %432 = vsyncadd [#allocation3], %s431
      %s434 = sshll.u32 [#allocation2], 4
      %s435 = int_to_ptr.vmem [resolvable:$true] %s434
      %437 = dma.vmem_to_hbm [thread:$0]  %s435, 32, %s9, [#allocation3]
    $region41: #{tpu_custom_call.1} parent=1 // pred_fallthru
      _
    // Predicated region
    $region42: #{tpu_custom_call.1} parent=1 // pred_check
      _
    $region43: #{tpu_custom_call.1} parent=1 // pred_check_branch
      %439 = sbr.rel (0) target = $region45
    $region44: #{tpu_custom_call.1} parent=1 // pred_region
      %440 = dma.done [#allocation3], 32
    $region45: #{tpu_custom_call.1} parent=1 // pred_fallthru
      _
    %441 = vsyncpa [#allocation3], 1

</llo_original>
